<compile_context>
chip_gen: v7x
topology: tpu7x:2x2x1
jax: 0.10.0
libtpu: 0.0.40
codegen_flags: <defaults>
</compile_context>

<pallas_src>
import jax
import jax.numpy as jnp
from jax.experimental import pallas as pl
from jax.experimental.pallas import tpu as pltpu


def _logreg_kernel(x_ref, wt_ref, b_ref, o_ref):
    # x_ref: (TB, D) VMEM    wt_ref: (D, 1) VMEM (resident)    b_ref: (1, 1) SMEM
    # o_ref: (TB, 1) VMEM
    logits = jnp.dot(x_ref[...], wt_ref[...],
                     preferred_element_type=jnp.float32)      # (TB, 1), MXU, f32 acc
    logits = logits + b_ref[0, 0]                             # scalar bias from SMEM
    o_ref[...] = jax.nn.sigmoid(logits).astype(o_ref.dtype)


def _round_up(n, m):
    return ((n + m - 1) // m) * m


def _round_down(n, m):
    return (n // m) * m


def _vmem_limit_bytes():
    # Per-generation scoped-VMEM request: ~75% of physical, capped at 100 MiB.
    #   v7x (64 MiB physical)  -> 48 MiB
    #   v5e/v6e (128 MiB)      -> 96 MiB
    cap = 64 << 20  # conservative fallback = smallest physical VMEM (v7x)
    try:
        info = pltpu.get_tpu_info()
        cap = int(getattr(info, "vmem_capacity_bytes", cap))
    except Exception:
        pass
    return int(min(cap * 3 // 4, 100 << 20))


def _pick_block_rows(B, D, vmem_limit, target_tile_bytes):
    """Rows per batch tile: byte-budgeted, sublane-aligned, VMEM- and grid-safe."""
    bytes_per_row = 4 * D
    # (1) byte budget: ~target_tile_bytes of x per tile (amortizes per-step overhead)
    tb = max(8, _round_down(target_tile_bytes // bytes_per_row, 8))
    # (2) keep >= ~8 grid steps so v7x's two TCs each get several pipelined tiles
    tb = min(tb, max(8, _round_up(pl.cdiv(B, 8), 8)))
    # (3) never exceed the (sublane-rounded) batch
    tb = min(tb, _round_up(B, 8))
    # (4) VMEM safety: double-buffered x tiles (+ weight/out/scratch) under the limit
    max_tb = max(8, _round_down((vmem_limit // 3) // bytes_per_row, 8))
    return min(tb, max_tb)


def logistic_regression(x, weight, bias, *, target_tile_bytes=4 << 20):
    """x: (B, D) f32, weight: (1, D) f32, bias: (1,) f32 -> (B, 1) f32."""
    B, D = x.shape
    vmem_limit = _vmem_limit_bytes()
    TB = _pick_block_rows(B, D, vmem_limit, target_tile_bytes)
    num_tiles = pl.cdiv(B, TB)  # ragged last tile: Pallas masks OOB output writes

    w_t = weight.reshape(1, D).astype(jnp.float32).T   # (D, 1), transposed once outside
    b2d = bias.reshape(1, 1).astype(jnp.float32)

    out = pl.pallas_call(
        _logreg_kernel,
        out_shape=jax.ShapeDtypeStruct((B, 1), jnp.float32),
        grid_spec=pltpu.PrefetchScalarGridSpec(
            num_scalar_prefetch=0,
            grid=(num_tiles,),
            in_specs=[
                pl.BlockSpec((TB, D), lambda i: (i, 0)),      # x: streamed per tile
                pl.BlockSpec((D, 1), lambda i: (0, 0)),       # W^T: resident in VMEM
                pl.BlockSpec(memory_space=pltpu.MemorySpace.SMEM),  # bias scalar
            ],
            out_specs=pl.BlockSpec((TB, 1), lambda i: (i, 0)),
        ),
        compiler_params=pltpu.CompilerParams(
            dimension_semantics=("parallel",),   # shard batch tiles across TCs (v7x)
            vmem_limit_bytes=vmem_limit,
        ),
        cost_estimate=pl.CostEstimate(
            flops=2 * B * D,
            transcendentals=B,
            bytes_accessed=4 * (B * D + D + B),
        ),
    )(x, w_t, b2d)
    return out


if __name__ == "__main__":
    key = jax.random.PRNGKey(0)
    k_x, k_w, k_b, k_x2, k_x3 = jax.random.split(key, 5)

    # --- small shape consistent with the module ---
    batch, dim_x = 8, 32
    x = jax.random.normal(k_x, (batch, dim_x), dtype=jnp.float32)
    # Param init matching torch.nn.Linear's U(-1/sqrt(dim_x), 1/sqrt(dim_x))
    bound = 1.0 / jnp.sqrt(jnp.float32(dim_x))
    weight = jax.random.uniform(k_w, (1, dim_x), jnp.float32, -bound, bound)
    bias = jax.random.uniform(k_b, (1,), jnp.float32, -bound, bound)

    y = logistic_regression(x, weight, bias)
    jax.block_until_ready(y)
    y_ref = jax.nn.sigmoid(x @ weight.T + bias)
    assert y.shape == (batch, 1)
    assert jnp.allclose(y, y_ref, atol=5e-5), (y, y_ref)

    # --- multi-tile + ragged last block (B not a multiple of the tile, no jnp.pad) ---
    batch2, dim_x2 = 1037, 128
    x2 = jax.random.normal(k_x2, (batch2, dim_x2), dtype=jnp.float32)
    bound2 = 1.0 / jnp.sqrt(jnp.float32(dim_x2))
    w2 = jax.random.uniform(k_w, (1, dim_x2), jnp.float32, -bound2, bound2)
    b2 = jax.random.uniform(k_b, (1,), jnp.float32, -bound2, bound2)

    y2 = logistic_regression(x2, w2, b2)
    jax.block_until_ready(y2)
    y2_ref = jax.nn.sigmoid(x2 @ w2.T + b2)
    assert y2.shape == (batch2, 1)
    assert bool(jnp.isfinite(y2).all())
    assert jnp.allclose(y2, y2_ref, atol=5e-5)

    # --- larger batch exercising the byte-budget / grid-step tile selection ---
    batch3, dim_x3 = 4096, 256
    x3 = jax.random.normal(k_x3, (batch3, dim_x3), dtype=jnp.float32)
    bound3 = 1.0 / jnp.sqrt(jnp.float32(dim_x3))
    w3 = jax.random.uniform(k_w, (1, dim_x3), jnp.float32, -bound3, bound3)
    b3 = jax.random.uniform(k_b, (1,), jnp.float32, -bound3, bound3)

    y3 = logistic_regression(x3, w3, b3)
    jax.block_until_ready(y3)
    y3_ref = jax.nn.sigmoid(x3 @ w3.T + b3)
    assert y3.shape == (batch3, 1)
    assert jnp.allclose(y3, y3_ref, atol=5e-5)

    print("KERNEL_OK")
</pallas_src>

<mosaic_0001>
module attributes {stable_mosaic.version = 11 : i64} {
  func.func @_logreg_kernel(%arg0: i32, %arg1: memref<8x32xf32, #tpu.memory_space<vmem>>, %arg2: memref<32x1xf32, #tpu.memory_space<vmem>>, %arg3: memref<1x1xf32, #tpu.memory_space<smem>>, %arg4: memref<8x1xf32, #tpu.memory_space<vmem>>) attributes {dimension_semantics = [#tpu.dimension_semantics<parallel>], iteration_bounds = array<i64: 1>, scalar_prefetch = 0 : i64, scratch_operands = 0 : i64, tpu.core_type = #tpu.core_type<tc>, window_params = [{transform_indices = @transform_0, window_bounds = array<i64: 8, 32>}, {pipeline_mode = #tpu.pipeline_mode<synchronous>, transform_indices = @transform_1, window_bounds = array<i64: 32, 1>}, {transform_indices = @transform_2, window_bounds = array<i64: 1, 1>}, {transform_indices = @transform_3, window_bounds = array<i64: 8, 1>}]} {
    %c0 = arith.constant 0 : index
    %c0_0 = arith.constant 0 : index
    %0 = vector.load %arg1[%c0, %c0_0] : memref<8x32xf32, #tpu.memory_space<vmem>>, vector<8x32xf32>
    %c0_1 = arith.constant 0 : index
    %c0_2 = arith.constant 0 : index
    %1 = vector.load %arg2[%c0_1, %c0_2] : memref<32x1xf32, #tpu.memory_space<vmem>>, vector<32x1xf32>
    %cst = arith.constant dense<0.000000e+00> : vector<8x1xf32>
    %2 = tpu.matmul %0, %1, %cst {dimension_numbers = #tpu.dot_dimension_numbers<[1], [0], [0], [1], [0, 0, 1, 1], [], []>} : vector<8x32xf32>, vector<32x1xf32>, vector<8x1xf32> -> vector<8x1xf32>
    %c0_3 = arith.constant 0 : index
    %c0_4 = arith.constant 0 : index
    %3 = memref.load %arg3[%c0_3, %c0_4] : memref<1x1xf32, #tpu.memory_space<smem>>
    %4 = vector.broadcast %3 : f32 to vector<8x1xf32>
    %5 = arith.addf %2, %4 : vector<8x1xf32>
    %6 = arith.negf %5 : vector<8x1xf32>
    %7 = math.exp %6 : vector<8x1xf32>
    %cst_5 = arith.constant 1.000000e+00 : f32
    %8 = vector.broadcast %cst_5 : f32 to vector<8x1xf32>
    %9 = arith.addf %8, %7 : vector<8x1xf32>
    %10 = arith.divf %8, %9 : vector<8x1xf32>
    %c0_6 = arith.constant 0 : index
    %c0_7 = arith.constant 0 : index
    %11 = vector.load %arg4[%c0_6, %c0_7] : memref<8x1xf32, #tpu.memory_space<vmem>>, vector<8x1xf32>
    tpu.vector_store %arg4[%c0_6, %c0_7], %10 {strides = array<i32>} : memref<8x1xf32, #tpu.memory_space<vmem>>, vector<8x1xf32>,
    return
  }
  func.func @transform_0(%arg0: i32) -> (i32, i32) {
    %c0_i32 = arith.constant 0 : i32
    %c0_i32_0 = arith.constant 0 : i32
    return %arg0, %c0_i32 : i32, i32
  }
  func.func @transform_1(%arg0: i32) -> (i32, i32) {
    %c0_i32 = arith.constant 0 : i32
    %c0_i32_0 = arith.constant 0 : i32
    %c0_i32_1 = arith.constant 0 : i32
    return %c0_i32, %c0_i32_0 : i32, i32
  }
  func.func @transform_2(%arg0: i32) -> (i32, i32) {
    %c0_i32 = arith.constant 0 : i32
    %c0_i32_0 = arith.constant 0 : i32
    %c0_i32_1 = arith.constant 0 : i32
    return %c0_i32, %c0_i32_0 : i32, i32
  }
  func.func @transform_3(%arg0: i32) -> (i32, i32) {
    %c0_i32 = arith.constant 0 : i32
    %c0_i32_0 = arith.constant 0 : i32
    return %arg0, %c0_i32 : i32, i32
  }
}

</mosaic_0001>

<llo_original>
// kernel: tpu_custom_call.1
$region0: #{tpu_custom_call.1}
  #allocation0 [shape = 'u32[]', space=smem, size = 0x4, offset = 0x4, fixed_abs, tag = 'smem constant byte address 0x4 - core index']
  #allocation1 [shape = 'u32[144,128]{1,0:T(1,128)}', space=vmem, size = 0x12000, scoped, tag = 'internal scratch']
  #allocation2 [shape = 'f32[1,1]{1,0:T(1,128)S(6)}', space=smem, size = 0x200, scoped, tag = 'scoped memory for tpu_custom_call.1']
  %s0 = inlined_call_operand.vmem [shape: f32[8,32], index: 0, kind: input, shape index: {}]
  %s1 = inlined_call_operand.vmem [shape: f32[32,1], index: 1, kind: input, shape index: {}]
  %s2 = inlined_call_operand.<no memory space> [shape: f32[1,1], index: 2, kind: input, shape index: {}]
  %s3 = inlined_call_operand.vmem [shape: f32[8,1], index: 3, kind: output, shape index: {}]
  %s4 = sld [smem:[#allocation0]]
  $region22: #{tpu_custom_call.1} parent=0
    _
  %s6 = ssub.s32 1, %s4
  %s7 = scalar_select 0, %s6, %s4
  %8 = sst [smem:[#allocation2]] %s2
  // Predicated region
  $region2: #{tpu_custom_call.1} parent=0 // pred_check
    _
  $region3: #{tpu_custom_call.1} parent=0 // pred_check_branch
    %10 = sbr.rel (0) target = $region5
  $region4: #{tpu_custom_call.1} parent=0 // pred_region
    _
  $region5: #{tpu_custom_call.1} parent=0 // pred_fallthru
    _
  // Predicated region
  $region6: #{tpu_custom_call.1} parent=0 // pred_check
    _
  $region7: #{tpu_custom_call.1} parent=0 // pred_check_branch
    %12 = sbr.rel (0) target = $region9
  $region8: #{tpu_custom_call.1} parent=0 // pred_region
    _
  $region9: #{tpu_custom_call.1} parent=0 // pred_fallthru
    _
  // Predicated region
  $region10: #{tpu_custom_call.1} parent=0 // pred_check
    _
  $region11: #{tpu_custom_call.1} parent=0 // pred_check_branch
    %14 = sbr.rel (0) target = $region13
  $region12: #{tpu_custom_call.1} parent=0 // pred_region
    _
  $region13: #{tpu_custom_call.1} parent=0 // pred_fallthru
    _
  %v15 = vld [vmem:[%s0] sm:$0xff]
  %v16 = vld [vmem:[%s1] sm:$0xff]
  %v17 = vld [vmem:[%s1 + $0x8] sm:$0xff]
  %v18 = vld [vmem:[%s1 + $0x10] sm:$0xff]
  %v19 = vld [vmem:[%s1 + $0x18] sm:$0xff]
  %s20 = sld [smem:[#allocation2]]
  %v21 = vstv %s20
  %vm22 = vcmask 261120
  %v24 = vsel %vm22, %v15, 0
  %26 = vmatprep.subr.mxu0 0.0
  %27 = vmatpush1.msra.mxu0 %v16
  %28 = vmatprep.subr.mxu0 0.0
  %29 = vmatpush1.msra.mxu0 %v17
  %30 = vmatprep.subr.mxu0 0.0
  %31 = vmatpush1.msra.mxu0 %v18
  %32 = vmatprep.subr.mxu0 0.0
  %33 = vmatpush1.msra.mxu0 %v19
  %34 = vmatprep.subr.mxu0 0.0
  %35 = vmatpush1.msra.mxu0 0.0
  %36 = vmatprep.subr.mxu0 0.0
  %37 = vmatpush1.msra.mxu0 0.0
  %38 = vmatprep.subr.mxu0 0.0
  %39 = vmatpush1.msra.mxu0 0.0
  %40 = vmatprep.subr.mxu0 0.0
  %41 = vmatpush1.msra.mxu0 0.0
  %42 = vmatprep.subr.mxu0 0.0
  %43 = vmatpush1.msra.mxu0 0.0
  %44 = vmatprep.subr.mxu0 0.0
  %45 = vmatpush1.msra.mxu0 0.0
  %46 = vmatprep.subr.mxu0 0.0
  %47 = vmatpush1.msra.mxu0 0.0
  %48 = vmatprep.subr.mxu0 0.0
  %49 = vmatpush1.msra.mxu0 0.0
  %50 = vmatprep.subr.mxu0 0.0
  %51 = vmatpush1.msra.mxu0 0.0
  %52 = vmatprep.subr.mxu0 0.0
  %53 = vmatpush1.msra.mxu0 0.0
  %54 = vmatprep.subr.mxu0 0.0
  %55 = vmatpush1.msra.mxu0 0.0
  %56 = vmatprep.subr.mxu0 0.0
  %57 = vmatpush1.msra.mxu0 0.0
  %58 = vmatprep.subr.mxu0 0.0
  %59 = vmatpush1.msra.mxu0 0.0
  %60 = vmatprep.subr.mxu0 0.0
  %61 = vmatpush1.msra.mxu0 0.0
  %62 = vmatprep.subr.mxu0 0.0
  %63 = vmatpush1.msra.mxu0 0.0
  %64 = vmatprep.subr.mxu0 0.0
  %65 = vmatpush1.msra.mxu0 0.0
  %66 = vmatprep.subr.mxu0 0.0
  %67 = vmatpush1.msra.mxu0 0.0
  %68 = vmatprep.subr.mxu0 0.0
  %69 = vmatpush1.msra.mxu0 0.0
  %70 = vmatprep.subr.mxu0 0.0
  %71 = vmatpush1.msra.mxu0 0.0
  %72 = vmatprep.subr.mxu0 0.0
  %73 = vmatpush1.msra.mxu0 0.0
  %74 = vmatprep.subr.mxu0 0.0
  %75 = vmatpush1.msra.mxu0 0.0
  %76 = vmatprep.subr.mxu0 0.0
  %77 = vmatpush1.msra.mxu0 0.0
  %78 = vmatprep.subr.mxu0 0.0
  %79 = vmatpush1.msra.mxu0 0.0
  %80 = vmatprep.subr.mxu0 0.0
  %81 = vmatpush1.msra.mxu0 0.0
  %82 = vmatprep.subr.mxu0 0.0
  %83 = vmatpush1.msra.mxu0 0.0
  %84 = vmatprep.subr.mxu0 0.0
  %85 = vmatpush1.msra.mxu0 0.0
  %86 = vmatprep.subr.mxu0 0.0
  %87 = vmatpush1.msra.mxu0 0.0
  %88 = vmatprep.subr.mxu0 0.0
  %89 = vmatpush1.msra.mxu0 0.0
  %90 = vmatprep.mubr.f32.mxu0 0.0
  %91 = vmatmul.mubr.f32.gmra.mrb[0].mxu0 %v24
  %v92 = vpop.f32.mrb[0].mxu0
  %v93 = vadd.f32 %v21, %v92
  %v94 = vpop.f32.mrb[0].mxu0
  %95 = vdwg.mxu0
  %v96 = vxor.u32 %v93, 2147483648
  %v97 = vmul.f32 %v96, 1.442695
  %v98 = vpow.pop %v97
  %v99 = vadd.f32 %v98, 1.0
  %v100 = vrcp.pop %v99
  %v101 = vmul.f32 1.0, %v100
  %vm102 = vcmask 7168
  %103 = vst.msk [vmem:[%s3] sm:$0xff] %vm102, %v101
  // Predicated region
  $region14: #{tpu_custom_call.1} parent=0 // pred_check
    _
  $region15: #{tpu_custom_call.1} parent=0 // pred_check_branch
    %105 = sbr.rel (0) target = $region17
  $region16: #{tpu_custom_call.1} parent=0 // pred_region
    _
  $region17: #{tpu_custom_call.1} parent=0 // pred_fallthru
    _
  // Predicated region
  $region18: #{tpu_custom_call.1} parent=0 // pred_check
    _
  $region19: #{tpu_custom_call.1} parent=0 // pred_check_branch
    %107 = sbr.rel (0) target = $region21
  $region20: #{tpu_custom_call.1} parent=0 // pred_region
    _
  $region21: #{tpu_custom_call.1} parent=0 // pred_fallthru
    _

</llo_original>
